<compile_context>
chip_gen: v7x
topology: tpu7x:2x2x1
jax: 0.10.0
libtpu: 0.0.40
codegen_flags: <defaults>
</compile_context>

<pallas_src>
import functools

import jax
import jax.numpy as jnp
from jax.experimental import pallas as pl
from jax.experimental.pallas import tpu as pltpu


def fcnn_fourier_sin_kernel(t_ref, w1_ref, b1_ref, w2_ref, b2_ref, o_ref,
                            *, sin_bf16=False):
    # Feature-major (lane-dense) layout, specialised to n_in == n_out == 1:
    #   t_ref : (1, T)     batch points on the lane axis
    #   w1_ref: (2H, 1)    first-layer weight column
    #   b1_ref: (2H, 1)    first-layer bias column
    #   w2_ref: (2H, 1)    second-layer weight column
    #   b2_ref: (1, 1)     scalar bias in SMEM
    #   o_ref : (1, T)
    t = t_ref[...]                                     # (1, T)

    # First "Linear" with K=1: VPU broadcast outer product, no MXU round trip.
    h = w1_ref[...] * t + b1_ref[...]                  # (2H, 1)*(1, T) -> (2H, T)

    if sin_bf16:
        # Optional (v6e/v7x only): packed bf16 transcendentals ~2x EUP throughput.
        s = jnp.sin(h.astype(jnp.bfloat16)).astype(jnp.float32)
    else:
        s = jnp.sin(h)                                 # EUP, full 128-lane vregs

    # Second "Linear" with n_out=1: broadcast multiply + sublane reduce (XLU),
    # instead of a 1-row MXU matmul.
    out = jnp.sum(w2_ref[...] * s, axis=0, keepdims=True)   # (1, T)
    o_ref[...] = (out + b2_ref[0, 0]).astype(o_ref.dtype)


def fcnn_fourier_sin(t, w1, b1, w2, b2, *, tile_n=4096, sin_bf16=False):
    """t: (N, 1) float32.  w1: (1, 2H), b1: (1, 2H), w2: (2H, 1), b2: (1, 1).

    Returns (N, 1) float32 == sin(t @ w1 + b1) @ w2 + b2.
    """
    N, n_in = t.shape
    two_h = w1.shape[1]
    n_out = w2.shape[1]
    # Kernel is specialised to the module defaults (n_input_units = n_output_units = 1).
    # TODO(synk): general n_in/n_out would fall back to MXU matmuls.
    assert n_in == 1 and n_out == 1, "kernel specialised for n_in == n_out == 1"

    # --- batch tiling (lane-dense) ----------------------------------------
    lane = 128
    tile_n = pl.cdiv(tile_n, lane) * lane                   # multiple of 128
    tile = max(min(tile_n, pl.cdiv(N, lane) * lane), lane)  # shrink for tiny N
    n_pad = pl.cdiv(N, tile) * tile
    grid = (n_pad // tile,)

    # --- wrapper-side layout plumbing (no kernel compute) ------------------
    t_row = t.reshape(1, N).astype(jnp.float32)             # batch on lane axis
    if n_pad != N:
        t_row = jnp.pad(t_row, ((0, 0), (0, n_pad - N)))    # ragged last tile
    w1_col = w1.reshape(two_h, 1).astype(jnp.float32)
    b1_col = b1.reshape(two_h, 1).astype(jnp.float32)
    w2_col = w2.reshape(two_h, 1).astype(jnp.float32)
    b2_s = b2.reshape(1, 1).astype(jnp.float32)

    cost = pl.CostEstimate(
        flops=4 * N * two_h,                 # 2 muls + 2 adds per hidden unit
        transcendentals=N * two_h,           # one sin per hidden unit per point
        bytes_accessed=4 * (2 * N + 3 * two_h + 1),
    )

    out_row = pl.pallas_call(
        functools.partial(fcnn_fourier_sin_kernel, sin_bf16=sin_bf16),
        out_shape=jax.ShapeDtypeStruct((1, n_pad), jnp.float32),
        grid=grid,
        in_specs=[
            pl.BlockSpec((1, tile), lambda i: (0, i)),       # t tile (pipelined)
            pl.BlockSpec((two_h, 1), lambda i: (0, 0)),      # w1 (resident)
            pl.BlockSpec((two_h, 1), lambda i: (0, 0)),      # b1 (resident)
            pl.BlockSpec((two_h, 1), lambda i: (0, 0)),      # w2 (resident)
            pl.BlockSpec(memory_space=pltpu.MemorySpace.SMEM),  # b2 scalar
        ],
        out_specs=pl.BlockSpec((1, tile), lambda i: (0, i)),
        compiler_params=pltpu.CompilerParams(
            dimension_semantics=("parallel",),               # megacore sharding
        ),
        cost_estimate=cost,
    )(t_row, w1_col, b1_col, w2_col, b2_s)

    return out_row[0, :N].reshape(N, 1)


def init_params(key, n_input_units=1, n_output_units=1, n_hidden_units=32):
    """Deterministic init matching nn.Linear's U(-1/sqrt(fan_in), 1/sqrt(fan_in))."""
    two_h = 2 * n_hidden_units
    k1, k2, k3, k4 = jax.random.split(key, 4)

    bound1 = 1.0 / jnp.sqrt(jnp.float32(n_input_units))
    # Stored as (in, out) = W^T of the PyTorch (out, in) weight.
    w1 = jax.random.uniform(k1, (n_input_units, two_h), jnp.float32, -bound1, bound1)
    b1 = jax.random.uniform(k2, (1, two_h), jnp.float32, -bound1, bound1)

    bound2 = 1.0 / jnp.sqrt(jnp.float32(two_h))
    w2 = jax.random.uniform(k3, (two_h, n_output_units), jnp.float32, -bound2, bound2)
    b2 = jax.random.uniform(k4, (1, n_output_units), jnp.float32, -bound2, bound2)
    return w1, b1, w2, b2


if __name__ == "__main__":
    key = jax.random.PRNGKey(0)
    k_in, k_param = jax.random.split(key)

    N = 300               # ragged on purpose: exercises padding + multi-tile grid
    n_input_units = 1
    n_output_units = 1
    n_hidden_units = 32

    t = jax.random.uniform(k_in, (N, n_input_units), jnp.float32)
    w1, b1, w2, b2 = init_params(k_param, n_input_units, n_output_units, n_hidden_units)

    # Small tile for the demo so the grid has several steps; production uses the
    # default tile_n=4096 (~1 MiB of (2H, TILE) f32 intermediates per step).
    out = fcnn_fourier_sin(t, w1, b1, w2, b2, tile_n=128)
    out = jax.block_until_ready(out)

    # Pure-JAX reference check (same math as the PyTorch forward).
    ref = jnp.sin(t @ w1 + b1) @ w2 + b2
    assert out.shape == (N, n_output_units)
    assert jnp.allclose(out, ref, atol=1e-5, rtol=1e-5)

    print("KERNEL_OK")
</pallas_src>

<mosaic_0001>
module attributes {stable_mosaic.version = 11 : i64} {
  func.func @fcnn_fourier_sin_kernel(%arg0: i32, %arg1: memref<1x128xf32, #tpu.memory_space<vmem>>, %arg2: memref<64x1xf32, #tpu.memory_space<vmem>>, %arg3: memref<64x1xf32, #tpu.memory_space<vmem>>, %arg4: memref<64x1xf32, #tpu.memory_space<vmem>>, %arg5: memref<1x1xf32, #tpu.memory_space<smem>>, %arg6: memref<1x128xf32, #tpu.memory_space<vmem>>) attributes {dimension_semantics = [#tpu.dimension_semantics<parallel>], iteration_bounds = array<i64: 3>, scalar_prefetch = 0 : i64, scratch_operands = 0 : i64, tpu.core_type = #tpu.core_type<tc>, window_params = [{transform_indices = @transform_0, window_bounds = array<i64: 1, 128>}, {pipeline_mode = #tpu.pipeline_mode<synchronous>, transform_indices = @transform_1, window_bounds = array<i64: 64, 1>}, {pipeline_mode = #tpu.pipeline_mode<synchronous>, transform_indices = @transform_2, window_bounds = array<i64: 64, 1>}, {pipeline_mode = #tpu.pipeline_mode<synchronous>, transform_indices = @transform_3, window_bounds = array<i64: 64, 1>}, {transform_indices = @transform_4, window_bounds = array<i64: 1, 1>}, {transform_indices = @transform_5, window_bounds = array<i64: 1, 128>}]} {
    %c0 = arith.constant 0 : index
    %c0_0 = arith.constant 0 : index
    %0 = vector.load %arg1[%c0, %c0_0] : memref<1x128xf32, #tpu.memory_space<vmem>>, vector<1x128xf32>
    %c0_1 = arith.constant 0 : index
    %c0_2 = arith.constant 0 : index
    %1 = vector.load %arg2[%c0_1, %c0_2] : memref<64x1xf32, #tpu.memory_space<vmem>>, vector<64x1xf32>
    %2 = vector.broadcast %1 : vector<64x1xf32> to vector<64x128xf32>
    %3 = vector.broadcast %0 : vector<1x128xf32> to vector<64x128xf32>
    %4 = arith.mulf %2, %3 : vector<64x128xf32>
    %c0_3 = arith.constant 0 : index
    %c0_4 = arith.constant 0 : index
    %5 = vector.load %arg3[%c0_3, %c0_4] : memref<64x1xf32, #tpu.memory_space<vmem>>, vector<64x1xf32>
    %6 = vector.broadcast %5 : vector<64x1xf32> to vector<64x128xf32>
    %7 = arith.addf %4, %6 : vector<64x128xf32>
    %8 = math.sin %7 : vector<64x128xf32>
    %c0_5 = arith.constant 0 : index
    %c0_6 = arith.constant 0 : index
    %9 = vector.load %arg4[%c0_5, %c0_6] : memref<64x1xf32, #tpu.memory_space<vmem>>, vector<64x1xf32>
    %10 = vector.broadcast %9 : vector<64x1xf32> to vector<64x128xf32>
    %11 = arith.mulf %10, %8 : vector<64x128xf32>
    %cst = arith.constant dense<0.000000e+00> : vector<128xf32>
    %12 = vector.multi_reduction <add>, %11, %cst [0] : vector<64x128xf32> to vector<128xf32>
    %13 = vector.shape_cast %12 : vector<128xf32> to vector<1x128xf32>
    %c0_7 = arith.constant 0 : index
    %c0_8 = arith.constant 0 : index
    %14 = memref.load %arg5[%c0_7, %c0_8] : memref<1x1xf32, #tpu.memory_space<smem>>
    %15 = vector.broadcast %14 : f32 to vector<1x128xf32>
    %16 = arith.addf %13, %15 : vector<1x128xf32>
    %c0_9 = arith.constant 0 : index
    %c0_10 = arith.constant 0 : index
    %17 = vector.load %arg6[%c0_9, %c0_10] : memref<1x128xf32, #tpu.memory_space<vmem>>, vector<1x128xf32>
    tpu.vector_store %arg6[%c0_9, %c0_10], %16 {strides = array<i32>} : memref<1x128xf32, #tpu.memory_space<vmem>>, vector<1x128xf32>,
    return
  }
  func.func @transform_0(%arg0: i32) -> (i32, i32) {
    %c0_i32 = arith.constant 0 : i32
    %c0_i32_0 = arith.constant 0 : i32
    return %c0_i32, %arg0 : i32, i32
  }
  func.func @transform_1(%arg0: i32) -> (i32, i32) {
    %c0_i32 = arith.constant 0 : i32
    %c0_i32_0 = arith.constant 0 : i32
    %c0_i32_1 = arith.constant 0 : i32
    return %c0_i32, %c0_i32_0 : i32, i32
  }
  func.func @transform_2(%arg0: i32) -> (i32, i32) {
    %c0_i32 = arith.constant 0 : i32
    %c0_i32_0 = arith.constant 0 : i32
    %c0_i32_1 = arith.constant 0 : i32
    return %c0_i32, %c0_i32_0 : i32, i32
  }
  func.func @transform_3(%arg0: i32) -> (i32, i32) {
    %c0_i32 = arith.constant 0 : i32
    %c0_i32_0 = arith.constant 0 : i32
    %c0_i32_1 = arith.constant 0 : i32
    return %c0_i32, %c0_i32_0 : i32, i32
  }
  func.func @transform_4(%arg0: i32) -> (i32, i32) {
    %c0_i32 = arith.constant 0 : i32
    %c0_i32_0 = arith.constant 0 : i32
    %c0_i32_1 = arith.constant 0 : i32
    return %c0_i32, %c0_i32_0 : i32, i32
  }
  func.func @transform_5(%arg0: i32) -> (i32, i32) {
    %c0_i32 = arith.constant 0 : i32
    %c0_i32_0 = arith.constant 0 : i32
    return %c0_i32, %arg0 : i32, i32
  }
}

</mosaic_0001>

<llo_original>
// kernel: tpu_custom_call.1
$region0: #{tpu_custom_call.1}
  #allocation0 [shape = 'u32[]', space=smem, size = 0x4, offset = 0x4, fixed_abs, tag = 'smem constant byte address 0x4 - core index']
  #allocation1 [shape = 'u32[144,128]{1,0:T(1,128)}', space=vmem, size = 0x12000, scoped, tag = 'internal scratch']
  #allocation2 [shape = 'f32[1,1]{1,0:T(1,128)S(6)}', space=smem, size = 0x200, scoped, tag = 'scoped memory for tpu_custom_call.1']
  %s0 = inlined_call_operand.vmem [shape: f32[1,384], index: 0, kind: input, shape index: {}]
  %s1 = inlined_call_operand.vmem [shape: f32[64,1], index: 1, kind: input, shape index: {}]
  %s2 = inlined_call_operand.vmem [shape: f32[64,1], index: 2, kind: input, shape index: {}]
  %s3 = inlined_call_operand.vmem [shape: f32[64,1], index: 3, kind: input, shape index: {}]
  %s4 = inlined_call_operand.<no memory space> [shape: f32[1,1], index: 4, kind: input, shape index: {}]
  %s5 = inlined_call_operand.hbm [shape: f32[1,384], index: 5, kind: output, shape index: {}]
  %s6 = sld [smem:[#allocation0]]
  $region53: #{tpu_custom_call.1} parent=0
    _
  %s8 = ssub.s32 1, %s6
  %s9 = scalar_select 0, %s8, %s6
  %10 = sst [smem:[#allocation2]] %s4
  $region1: #{tpu_custom_call.1} parent=0
    #allocation3 [shape = 'u8[1024]{0}', space=vmem, size = 0x400, scoped, tag = 'output window, operand 0']
    #allocation4 [shape = 's32[2]{0}', space=sflag, size = 0x8, scoped, tag = 'scoped memory for tpu_custom_call.1']
    %11 = vsyncpa [#allocation4], 0
    %s12 = scalar_lea.sflag [#allocation4], 1
    %13 = vsyncpa %s12, 0
    loop: start=0, step=1, limit=5
    $region2: #{tpu_custom_call.1} parent=1 // loop_pre_header
      _
    $region3: #{tpu_custom_call.1} parent=1 // loop_header
      %s15 = sphi 0, %s19
      %p16 = scmp.ge.s32.totalorder %s15, 5
      %s25 = sphi 0, %s27
      %s28 = sphi 0, %s25
      %s29 = sphi 0, %s28
      %s45 = sphi 0, %s29
      %s49 = sphi 0, %s49
      %s51 = sphi 0, %s49
      %s52 = sphi 0, %s51
      %s66 = sphi 0, %s52
      %s70 = sphi 0, %s70
      %s72 = sphi 0, %s70
      %s73 = sphi 0, %s72
      %s87 = sphi 0, %s73
      %s91 = sphi 0, %s91
      %s93 = sphi 0, %s91
      %s94 = sphi 0, %s93
      %s108 = sphi 0, %s94
      %s112 = sphi 0, %s112
      %s114 = sphi 0, %s112
      %s115 = sphi 0, %s114
      %s129 = sphi 0, %s115
      %s135 = sphi 0, %s137
      %s138 = sphi 0, %s135
      %s139 = sphi 0, %s138
      %s155 = sphi 0, %s139
    $region4: #{tpu_custom_call.1} parent=1 // loop_header_branch
      %18 = sbr.rel (%p16) target = $region8
    $region5: #{tpu_custom_call.1} parent=1 // loop_body
      %s20 = ssub.s32 %s15, 1
      %s21 = ssub.s32 %s15, 2
      %s22 = sadd.s32 %s15, 1
      %s23 = ssub.s32 %s15, %s22
      %p24 = scmp.eq.s32.totalorder %s23, 0
      %s26 = sadd.s32 %s25, 1
      %s27 = scalar_select %p24, %s25, %s26
      %p30 = pneg %p24
      %p31 = scmp.eq.s32.totalorder %s15, 2
      %p32 = por %p30, %p31
      %p33 = scmp.ne.s32.totalorder %s25, %s28
      %p34 = scmp.eq.s32.totalorder %s15, 0
      %p35 = por %p33, %p34
      %p36 = scmp.ne.s32.totalorder %s25, %s28
      %p37 = scmp.eq.s32.totalorder %s20, 2
      %p38 = por %p36, %p37
      %p39 = scmp.ne.s32.totalorder %s28, %s29
      %p40 = scmp.eq.s32.totalorder %s20, 0
      %p41 = por %p39, %p40
      %p42 = scmp.ne.s32.totalorder %s28, %s29
      %p43 = scmp.eq.s32.totalorder %s21, 2
      %p44 = por %p42, %p43
      %p46 = scmp.ne.s32.totalorder %s29, %s45
      %p47 = scmp.eq.s32.totalorder %s21, 0
      %p48 = por %p46, %p47
      %s50 = sadd.s32 %s49, 1
      %p53 = scmp.eq.s32.totalorder %s15, 2
      %p54 = scmp.ne.s32.totalorder %s49, %s51
      %p55 = scmp.eq.s32.totalorder %s15, 0
      %p56 = por %p54, %p55
      %p57 = scmp.ne.s32.totalorder %s49, %s51
      %p58 = scmp.eq.s32.totalorder %s20, 2
      %p59 = por %p57, %p58
      %p60 = scmp.ne.s32.totalorder %s51, %s52
      %p61 = scmp.eq.s32.totalorder %s20, 0
      %p62 = por %p60, %p61
      %p63 = scmp.ne.s32.totalorder %s51, %s52
      %p64 = scmp.eq.s32.totalorder %s21, 2
      %p65 = por %p63, %p64
      %p67 = scmp.ne.s32.totalorder %s52, %s66
      %p68 = scmp.eq.s32.totalorder %s21, 0
      %p69 = por %p67, %p68
      %s71 = sadd.s32 %s70, 1
      %p74 = scmp.eq.s32.totalorder %s15, 2
      %p75 = scmp.ne.s32.totalorder %s70, %s72
      %p76 = scmp.eq.s32.totalorder %s15, 0
      %p77 = por %p75, %p76
      %p78 = scmp.ne.s32.totalorder %s70, %s72
      %p79 = scmp.eq.s32.totalorder %s20, 2
      %p80 = por %p78, %p79
      %p81 = scmp.ne.s32.totalorder %s72, %s73
      %p82 = scmp.eq.s32.totalorder %s20, 0
      %p83 = por %p81, %p82
      %p84 = scmp.ne.s32.totalorder %s72, %s73
      %p85 = scmp.eq.s32.totalorder %s21, 2
      %p86 = por %p84, %p85
      %p88 = scmp.ne.s32.totalorder %s73, %s87
      %p89 = scmp.eq.s32.totalorder %s21, 0
      %p90 = por %p88, %p89
      %s92 = sadd.s32 %s91, 1
      %p95 = scmp.eq.s32.totalorder %s15, 2
      %p96 = scmp.ne.s32.totalorder %s91, %s93
      %p97 = scmp.eq.s32.totalorder %s15, 0
      %p98 = por %p96, %p97
      %p99 = scmp.ne.s32.totalorder %s91, %s93
      %p100 = scmp.eq.s32.totalorder %s20, 2
      %p101 = por %p99, %p100
      %p102 = scmp.ne.s32.totalorder %s93, %s94
      %p103 = scmp.eq.s32.totalorder %s20, 0
      %p104 = por %p102, %p103
      %p105 = scmp.ne.s32.totalorder %s93, %s94
      %p106 = scmp.eq.s32.totalorder %s21, 2
      %p107 = por %p105, %p106
      %p109 = scmp.ne.s32.totalorder %s94, %s108
      %p110 = scmp.eq.s32.totalorder %s21, 0
      %p111 = por %p109, %p110
      %s113 = sadd.s32 %s112, 1
      %p116 = scmp.eq.s32.totalorder %s15, 2
      %p117 = scmp.ne.s32.totalorder %s112, %s114
      %p118 = scmp.eq.s32.totalorder %s15, 0
      %p119 = por %p117, %p118
      %p120 = scmp.ne.s32.totalorder %s112, %s114
      %p121 = scmp.eq.s32.totalorder %s20, 2
      %p122 = por %p120, %p121
      %p123 = scmp.ne.s32.totalorder %s114, %s115
      %p124 = scmp.eq.s32.totalorder %s20, 0
      %p125 = por %p123, %p124
      %p126 = scmp.ne.s32.totalorder %s114, %s115
      %p127 = scmp.eq.s32.totalorder %s21, 2
      %p128 = por %p126, %p127
      %p130 = scmp.ne.s32.totalorder %s115, %s129
      %p131 = scmp.eq.s32.totalorder %s21, 0
      %p132 = por %p130, %p131
      %s133 = ssub.s32 %s15, %s22
      %p134 = scmp.eq.s32.totalorder %s133, 0
      %s136 = sadd.s32 %s135, 1
      %s137 = scalar_select %p134, %s135, %s136
      %p140 = pneg %p134
      %p141 = scmp.eq.s32.totalorder %s15, 2
      %p142 = por %p140, %p141
      %p143 = scmp.ne.s32.totalorder %s135, %s138
      %p144 = scmp.eq.s32.totalorder %s15, 0
      %p145 = por %p143, %p144
      %p146 = scmp.ne.s32.totalorder %s135, %s138
      %p147 = scmp.eq.s32.totalorder %s20, 2
      %p148 = por %p146, %p147
      %p149 = scmp.ne.s32.totalorder %s138, %s139
      %p150 = scmp.eq.s32.totalorder %s20, 0
      %p151 = por %p149, %p150
      %p152 = scmp.ne.s32.totalorder %s138, %s139
      %p153 = scmp.eq.s32.totalorder %s21, 2
      %p154 = por %p152, %p153
      %p156 = scmp.ne.s32.totalorder %s139, %s155
      %p157 = scmp.eq.s32.totalorder %s21, 0
      %p158 = por %p156, %p157
      %p159 = scmp.le.s32.totalorder 1, %s15
      %p160 = scmp.lt.s32.totalorder %s15, 4
      %p161 = pnand %p159, %p160
      %p162 = pneg %p161
      // Predicated region
      $region9: #{tpu_custom_call.1} parent=5 // pred_check
        _
      $region10: #{tpu_custom_call.1} parent=5 // pred_check_branch
        %164 = sbr.rel (%p161) target = $region12
      $region11: #{tpu_custom_call.1} parent=5 // pred_region
        %s165 = ssub.s32 %s15, 1
        // Predicated region
        $region13: #{tpu_custom_call.1} parent=11 // pred_check
          %p166 = pneg %p62
        $region14: #{tpu_custom_call.1} parent=11 // pred_check_branch
          %168 = sbr.rel (%p166) target = $region16
        $region15: #{tpu_custom_call.1} parent=11 // pred_region
          _
        $region16: #{tpu_custom_call.1} parent=11 // pred_fallthru
          _
        // Predicated region
        $region17: #{tpu_custom_call.1} parent=11 // pred_check
          %p169 = pneg %p83
        $region18: #{tpu_custom_call.1} parent=11 // pred_check_branch
          %171 = sbr.rel (%p169) target = $region20
        $region19: #{tpu_custom_call.1} parent=11 // pred_region
          _
        $region20: #{tpu_custom_call.1} parent=11 // pred_fallthru
          _
        // Predicated region
        $region21: #{tpu_custom_call.1} parent=11 // pred_check
          %p172 = pneg %p104
        $region22: #{tpu_custom_call.1} parent=11 // pred_check_branch
          %174 = sbr.rel (%p172) target = $region24
        $region23: #{tpu_custom_call.1} parent=11 // pred_region
          _
        $region24: #{tpu_custom_call.1} parent=11 // pred_fallthru
          _
        // Predicated region
        $region25: #{tpu_custom_call.1} parent=11 // pred_check
          %p175 = pneg %p125
        $region26: #{tpu_custom_call.1} parent=11 // pred_check_branch
          %177 = sbr.rel (%p175) target = $region28
        $region27: #{tpu_custom_call.1} parent=11 // pred_region
          _
        $region28: #{tpu_custom_call.1} parent=11 // pred_fallthru
          _
      $region12: #{tpu_custom_call.1} parent=5 // pred_fallthru
        _
      %p178 = scmp.lt.s32.totalorder %s15, 3
      // Predicated region
      $region29: #{tpu_custom_call.1} parent=5 // pred_check
        %p179 = pneg %p178
      $region30: #{tpu_custom_call.1} parent=5 // pred_check_branch
        %181 = sbr.rel (%p179) target = $region32
      $region31: #{tpu_custom_call.1} parent=5 // pred_region
        // Predicated region
        $region33: #{tpu_custom_call.1} parent=31 // pred_check
          %p182 = pneg %p35
        $region34: #{tpu_custom_call.1} parent=31 // pred_check_branch
          %184 = sbr.rel (%p182) target = $region36
        $region35: #{tpu_custom_call.1} parent=31 // pred_region
          %p185 = scmp.lt.s32.totalorder %s15, 2
          %s186 = scalar_select %p185, %s15, 2
          %s187 = scalar_lea.vmem %s0, %s186
        $region36: #{tpu_custom_call.1} parent=31 // pred_fallthru
          _
      $region32: #{tpu_custom_call.1} parent=5 // pred_fallthru
        _
      %p188 = scmp.le.s32.totalorder 1, %s15
      %p189 = scmp.lt.s32.totalorder %s15, 4
      %p190 = pnand %p188, %p189
      %p191 = pneg %p190
      // Predicated region
      $region37: #{tpu_custom_call.1} parent=5 // pred_check
        _
      $region38: #{tpu_custom_call.1} parent=5 // pred_check_branch
        %193 = sbr.rel (%p190) target = $region40
      $region39: #{tpu_custom_call.1} parent=5 // pred_region
        %s194 = ssub.s32 %s15, 1
        %p195 = scmp.lt.s32.totalorder %s20, 2
        %s196 = scalar_select %p195, %s20, 2
        %s197 = scalar_lea.vmem %s0, %s196
        %p198 = pneg %p41
        %p199 = pneg %p38
        %p200 = pneg %p62
        %p201 = pneg %p59
        %p202 = pneg %p83
        %p203 = pneg %p80
        %p204 = pneg %p104
        %p205 = pneg %p101
        %p206 = pneg %p125
        %p207 = pneg %p122
        %p208 = pneg %p151
        %p209 = pneg %p148
        %s210 = sand.u32 %s138, 1
        %s211 = scalar_lea.sflag [#allocation4], %s210
        %s212 = sand.u32 %s138, 1
        %s213 = scalar_lea.vmem [#allocation3], %s212
        %p214 = scmp.lt.s32.totalorder %s20, 2
        %s215 = scalar_select %p214, %s20, 2
        %s216 = scalar_lea.vmem %s0, %s215
        %v217 = vld [vmem:[%s216] sm:$0x1]
        %v218 = vld [vmem:[%s1] sm:$0xff]
        %v219 = vld [vmem:[%s1 + $0x8] sm:$0xff]
        %v220 = vld [vmem:[%s1 + $0x10] sm:$0xff]
        %v221 = vld [vmem:[%s1 + $0x18] sm:$0xff]
        %v222 = vld [vmem:[%s1 + $0x20] sm:$0xff]
        %v223 = vld [vmem:[%s1 + $0x28] sm:$0xff]
        %v224 = vld [vmem:[%s1 + $0x30] sm:$0xff]
        %v225 = vld [vmem:[%s1 + $0x38] sm:$0xff]
        %227 = vset.pattern.permute.xlu0 0
        %228 = vperm.xlu0 %227, %v218
        %v229 = vpop.permute.xlu0 %228
        %232 = vset.pattern.permute.xlu0 0
        %233 = vperm.xlu0 %232, %v219
        %v234 = vpop.permute.xlu0 %233
        %237 = vset.pattern.permute.xlu0 0
        %238 = vperm.xlu0 %237, %v220
        %v239 = vpop.permute.xlu0 %238
        %242 = vset.pattern.permute.xlu0 0
        %243 = vperm.xlu0 %242, %v221
        %v244 = vpop.permute.xlu0 %243
        %247 = vset.pattern.permute.xlu0 0
        %248 = vperm.xlu0 %247, %v222
        %v249 = vpop.permute.xlu0 %248
        %252 = vset.pattern.permute.xlu0 0
        %253 = vperm.xlu0 %252, %v223
        %v254 = vpop.permute.xlu0 %253
        %257 = vset.pattern.permute.xlu0 0
        %258 = vperm.xlu0 %257, %v224
        %v259 = vpop.permute.xlu0 %258
        %262 = vset.pattern.permute.xlu0 0
        %263 = vperm.xlu0 %262, %v225
        %v264 = vpop.permute.xlu0 %263
        %v267 = vlaneseq
        %v268 = vshrl.u32 %v267, 7
        %v269 = vsub.s32 0, %v268
        %v270 = vrot.slane %v217, %v269
        %v272 = vmul.f32 %v229, %v270
        %v273 = vmul.f32 %v234, %v270
        %v274 = vmul.f32 %v239, %v270
        %v275 = vmul.f32 %v244, %v270
        %v276 = vmul.f32 %v249, %v270
        %v277 = vmul.f32 %v254, %v270
        %v278 = vmul.f32 %v259, %v270
        %v279 = vmul.f32 %v264, %v270
        %v280 = vld [vmem:[%s2] sm:$0xff]
        %v281 = vld [vmem:[%s2 + $0x8] sm:$0xff]
        %v282 = vld [vmem:[%s2 + $0x10] sm:$0xff]
        %v283 = vld [vmem:[%s2 + $0x18] sm:$0xff]
        %v284 = vld [vmem:[%s2 + $0x20] sm:$0xff]
        %v285 = vld [vmem:[%s2 + $0x28] sm:$0xff]
        %v286 = vld [vmem:[%s2 + $0x30] sm:$0xff]
        %v287 = vld [vmem:[%s2 + $0x38] sm:$0xff]
        %289 = vset.pattern.permute.xlu0 0
        %290 = vperm.xlu0 %289, %v280
        %v291 = vpop.permute.xlu0 %290
        %294 = vset.pattern.permute.xlu0 0
        %295 = vperm.xlu0 %294, %v281
        %v296 = vpop.permute.xlu0 %295
        %299 = vset.pattern.permute.xlu0 0
        %300 = vperm.xlu0 %299, %v282
        %v301 = vpop.permute.xlu0 %300
        %304 = vset.pattern.permute.xlu0 0
        %305 = vperm.xlu0 %304, %v283
        %v306 = vpop.permute.xlu0 %305
        %309 = vset.pattern.permute.xlu0 0
        %310 = vperm.xlu0 %309, %v284
        %v311 = vpop.permute.xlu0 %310
        %314 = vset.pattern.permute.xlu0 0
        %315 = vperm.xlu0 %314, %v285
        %v316 = vpop.permute.xlu0 %315
        %319 = vset.pattern.permute.xlu0 0
        %320 = vperm.xlu0 %319, %v286
        %v321 = vpop.permute.xlu0 %320
        %324 = vset.pattern.permute.xlu0 0
        %325 = vperm.xlu0 %324, %v287
        %v326 = vpop.permute.xlu0 %325
        %v328 = vadd.f32 %v272, %v291
        %v329 = vadd.f32 %v273, %v296
        %v330 = vadd.f32 %v274, %v301
        %v331 = vadd.f32 %v275, %v306
        %v332 = vadd.f32 %v276, %v311
        %v333 = vadd.f32 %v277, %v316
        %v334 = vadd.f32 %v278, %v321
        %v335 = vadd.f32 %v279, %v326
        %v336 = vand.u32 2147483647, %v328
        %vm337 = vcmp.le.f32.partialorder %v336, 0.7853982
        %vm338 = vcmp.lt.s32.totalorder %v328, 0
        %v339 = vand.u32 %v328, 2139095040
        %v340 = vshrl.u32 %v339, 23
        %v341 = vsub.s32 %v340, 127
        %v342 = vand.u32 2147483647, %v328
        %v343 = vand.u32 %v342, 8388607
        %v344 = vor.u32 %v343, 8388608
        %v345 = vsub.s32 0, %v344
        %v346 = vadd.s32 %v341, 1
        %vm347 = vcmp.gt.s32.totalorder %v346, 0
        %v348 = vsel %vm347, %v346, 0
        %v349 = vshrl.u32 %v348, 5
        %v350 = vand.u32 %v348, 31
        %v351 = vsub.s32 32, %v350
        %v352 = vshrl.u32 683565275, %v351
        %v353 = vshll.u32 683565275, %v350
        %v354 = vshrl.u32 2475754826, %v351
        %v355 = vor.u32 %v353, %v354
        %v356 = vshll.u32 2475754826, %v350
        %v357 = vshrl.u32 2131351028, %v351
        %v358 = vor.u32 %v356, %v357
        %v359 = vshll.u32 2131351028, %v350
        %v360 = vshrl.u32 2102212464, %v351
        %v361 = vor.u32 %v359, %v360
        %v362 = vshll.u32 2102212464, %v350
        %v363 = vshrl.u32 920167782, %v351
        %v364 = vor.u32 %v362, %v363
        %v365 = vshll.u32 920167782, %v350
        %v366 = vshrl.u32 1326507024, %v351
        %v367 = vor.u32 %v365, %v366
        %vm368 = vcmp.lt.s32.totalorder %v349, 1
        %vm369 = vcmp.lt.s32.totalorder %v349, 2
        %vm370 = vcmp.lt.s32.totalorder %v349, 3
        %vm371 = vcmp.lt.s32.totalorder %v349, 4
        %v372 = vsel %vm368, %v352, %v355
        %v373 = vsel %vm371, %v361, 2102212464
        %v374 = vsel %vm370, %v358, %v373
        %v375 = vsel %vm369, %v372, %v374
        %v376 = vsel %vm368, %v355, %v358
        %v377 = vsel %vm371, %v364, 920167782
        %v378 = vsel %vm370, %v361, %v377
        %v379 = vsel %vm369, %v376, %v378
        %v380 = vsel %vm368, %v358, %v361
        %v381 = vsel %vm371, %v367, 1326507024
        %v382 = vsel %vm370, %v364, %v381
        %v383 = vsel %vm369, %v380, %v382
        %v384 = vshll.u32 %v344, 8
        %v385 = vmul.u32.u64.compose %v384, %v383
        %v386 = vextract.low.u32 %v385
        %v387 = vextract.high.u32 %v385
        %v388 = vmul.u32.u64.compose %v384, %v379
        %v389 = vextract.low.u32 %v388
        %v390 = vextract.high.u32 %v388
        %v391 = vmul.u32 %v384, %v375
        %v392 = vadd.s32 %v387, %v389
        %vm393 = vc.u32 %v387, %v389
        %v394 = vadd.s32 %v390, 1
        %v395 = vsel %vm393, %v394, %v390
        %v396 = vadd.s32 %v391, %v395
        %v397 = vadd.s32 %v396, 536870912
        %v398 = vshrl.u32 %v397, 30
        %v399 = vshll.u32 %v398, 30
        %v400 = vsub.s32 %v396, %v399
        %vm401 = vcmp.lt.s32.totalorder %v400, 0
        %v402 = vsub.s32 0, %v400
        %v403 = vsel %vm401, %v402, %v400
        %v404 = vclz %v403
        %v405 = vsub.s32 %v404, 2
        %vm406 = vcmp.gt.s32.totalorder 0, %v405
        %v407 = vsel %vm406, 0, %v405
        %v408 = vsub.s32 32, %v407
        %v409 = vshll.u32 %v400, %v407
        %v410 = vshrl.u32 %v392, %v408
        %v411 = vor.u32 %v409, %v410
        %v412 = vsub.s32 4294967266, %v407
        %v413 = vadd.s32 %v412, 127
        %v414 = vshll.u32 %v413, 23
        %v415 = vor.u32 4788187, %v414
        %v416 = vand.u32 2147483647, %v415
        %v418 = vcvt.s32.f32 %v411
        %v419 = vmul.f32 %v418, %v416
        %v420 = vxor.u32 %v419, 2147483648
        %v421 = vsel %vm338, %v420, %v419
        %v422 = vsub.s32 4, %v398
        %v423 = vsel %vm338, %v422, %v398
        %v424 = vsel %vm337, %v328, %v421
        %v425 = vsel %vm337, 0, %v423
        %v426 = vcosq.f32.pop %v424
        %v427 = vsinq.f32.pop %v424
        %vm428 = vweird.f32 %v328
        %v429 = vadd.s32 %v425, 3
        %v430 = vand.u32 %v429, 3
        %vm431 = vcmp.lt.s32.totalorder %v430, 2
        %vm432 = vcmp.eq.s32.totalorder %v430, 0
        %v433 = vxor.u32 %v427, 2147483648
        %v434 = vsel %vm432, %v426, %v433
        %vm435 = vcmp.eq.s32.totalorder %v430, 2
        %v436 = vxor.u32 %v426, 2147483648
        %v437 = vsel %vm435, %v436, %v427
        %v438 = vsel %vm431, %v434, %v437
        %v439 = vsel %vm428, nan, %v438
        %v440 = vand.u32 2147483647, %v329
        %vm441 = vcmp.le.f32.partialorder %v440, 0.7853982
        %vm442 = vcmp.lt.s32.totalorder %v329, 0
        %v443 = vand.u32 %v329, 2139095040
        %v444 = vshrl.u32 %v443, 23
        %v445 = vsub.s32 %v444, 127
        %v446 = vand.u32 2147483647, %v329
        %v447 = vand.u32 %v446, 8388607
        %v448 = vor.u32 %v447, 8388608
        %v449 = vsub.s32 0, %v448
        %v450 = vadd.s32 %v445, 1
        %vm451 = vcmp.gt.s32.totalorder %v450, 0
        %v452 = vsel %vm451, %v450, 0
        %v453 = vshrl.u32 %v452, 5
        %v454 = vand.u32 %v452, 31
        %v455 = vsub.s32 32, %v454
        %v456 = vshrl.u32 683565275, %v455
        %v457 = vshll.u32 683565275, %v454
        %v458 = vshrl.u32 2475754826, %v455
        %v459 = vor.u32 %v457, %v458
        %v460 = vshll.u32 2475754826, %v454
        %v461 = vshrl.u32 2131351028, %v455
        %v462 = vor.u32 %v460, %v461
        %v463 = vshll.u32 2131351028, %v454
        %v464 = vshrl.u32 2102212464, %v455
        %v465 = vor.u32 %v463, %v464
        %v466 = vshll.u32 2102212464, %v454
        %v467 = vshrl.u32 920167782, %v455
        %v468 = vor.u32 %v466, %v467
        %v469 = vshll.u32 920167782, %v454
        %v470 = vshrl.u32 1326507024, %v455
        %v471 = vor.u32 %v469, %v470
        %vm472 = vcmp.lt.s32.totalorder %v453, 1
        %vm473 = vcmp.lt.s32.totalorder %v453, 2
        %vm474 = vcmp.lt.s32.totalorder %v453, 3
        %vm475 = vcmp.lt.s32.totalorder %v453, 4
        %v476 = vsel %vm472, %v456, %v459
        %v477 = vsel %vm475, %v465, 2102212464
        %v478 = vsel %vm474, %v462, %v477
        %v479 = vsel %vm473, %v476, %v478
        %v480 = vsel %vm472, %v459, %v462
        %v481 = vsel %vm475, %v468, 920167782
        %v482 = vsel %vm474, %v465, %v481
        %v483 = vsel %vm473, %v480, %v482
        %v484 = vsel %vm472, %v462, %v465
        %v485 = vsel %vm475, %v471, 1326507024
        %v486 = vsel %vm474, %v468, %v485
        %v487 = vsel %vm473, %v484, %v486
        %v488 = vshll.u32 %v448, 8
        %v489 = vmul.u32.u64.compose %v488, %v487
        %v490 = vextract.low.u32 %v489
        %v491 = vextract.high.u32 %v489
        %v492 = vmul.u32.u64.compose %v488, %v483
        %v493 = vextract.low.u32 %v492
        %v494 = vextract.high.u32 %v492
        %v495 = vmul.u32 %v488, %v479
        %v496 = vadd.s32 %v491, %v493
        %vm497 = vc.u32 %v491, %v493
        %v498 = vadd.s32 %v494, 1
        %v499 = vsel %vm497, %v498, %v494
        %v500 = vadd.s32 %v495, %v499
        %v501 = vadd.s32 %v500, 536870912
        %v502 = vshrl.u32 %v501, 30
        %v503 = vshll.u32 %v502, 30
        %v504 = vsub.s32 %v500, %v503
        %vm505 = vcmp.lt.s32.totalorder %v504, 0
        %v506 = vsub.s32 0, %v504
        %v507 = vsel %vm505, %v506, %v504
        %v508 = vclz %v507
        %v509 = vsub.s32 %v508, 2
        %vm510 = vcmp.gt.s32.totalorder 0, %v509
        %v511 = vsel %vm510, 0, %v509
        %v512 = vsub.s32 32, %v511
        %v513 = vshll.u32 %v504, %v511
        %v514 = vshrl.u32 %v496, %v512
        %v515 = vor.u32 %v513, %v514
        %v516 = vsub.s32 4294967266, %v511
        %v517 = vadd.s32 %v516, 127
        %v518 = vshll.u32 %v517, 23
        %v519 = vor.u32 4788187, %v518
        %v520 = vand.u32 2147483647, %v519
        %v522 = vcvt.s32.f32 %v515
        %v523 = vmul.f32 %v522, %v520
        %v524 = vxor.u32 %v523, 2147483648
        %v525 = vsel %vm442, %v524, %v523
        %v526 = vsub.s32 4, %v502
        %v527 = vsel %vm442, %v526, %v502
        %v528 = vsel %vm441, %v329, %v525
        %v529 = vsel %vm441, 0, %v527
        %v530 = vcosq.f32.pop %v528
        %v531 = vsinq.f32.pop %v528
        %vm532 = vweird.f32 %v329
        %v533 = vadd.s32 %v529, 3
        %v534 = vand.u32 %v533, 3
        %vm535 = vcmp.lt.s32.totalorder %v534, 2
        %vm536 = vcmp.eq.s32.totalorder %v534, 0
        %v537 = vxor.u32 %v531, 2147483648
        %v538 = vsel %vm536, %v530, %v537
        %vm539 = vcmp.eq.s32.totalorder %v534, 2
        %v540 = vxor.u32 %v530, 2147483648
        %v541 = vsel %vm539, %v540, %v531
        %v542 = vsel %vm535, %v538, %v541
        %v543 = vsel %vm532, nan, %v542
        %v544 = vand.u32 2147483647, %v330
        %vm545 = vcmp.le.f32.partialorder %v544, 0.7853982
        %vm546 = vcmp.lt.s32.totalorder %v330, 0
        %v547 = vand.u32 %v330, 2139095040
        %v548 = vshrl.u32 %v547, 23
        %v549 = vsub.s32 %v548, 127
        %v550 = vand.u32 2147483647, %v330
        %v551 = vand.u32 %v550, 8388607
        %v552 = vor.u32 %v551, 8388608
        %v553 = vsub.s32 0, %v552
        %v554 = vadd.s32 %v549, 1
        %vm555 = vcmp.gt.s32.totalorder %v554, 0
        %v556 = vsel %vm555, %v554, 0
        %v557 = vshrl.u32 %v556, 5
        %v558 = vand.u32 %v556, 31
        %v559 = vsub.s32 32, %v558
        %v560 = vshrl.u32 683565275, %v559
        %v561 = vshll.u32 683565275, %v558
        %v562 = vshrl.u32 2475754826, %v559
        %v563 = vor.u32 %v561, %v562
        %v564 = vshll.u32 2475754826, %v558
        %v565 = vshrl.u32 2131351028, %v559
        %v566 = vor.u32 %v564, %v565
        %v567 = vshll.u32 2131351028, %v558
        %v568 = vshrl.u32 2102212464, %v559
        %v569 = vor.u32 %v567, %v568
        %v570 = vshll.u32 2102212464, %v558
        %v571 = vshrl.u32 920167782, %v559
        %v572 = vor.u32 %v570, %v571
        %v573 = vshll.u32 920167782, %v558
        %v574 = vshrl.u32 1326507024, %v559
        %v575 = vor.u32 %v573, %v574
        %vm576 = vcmp.lt.s32.totalorder %v557, 1
        %vm577 = vcmp.lt.s32.totalorder %v557, 2
        %vm578 = vcmp.lt.s32.totalorder %v557, 3
        %vm579 = vcmp.lt.s32.totalorder %v557, 4
        %v580 = vsel %vm576, %v560, %v563
        %v581 = vsel %vm579, %v569, 2102212464
        %v582 = vsel %vm578, %v566, %v581
        %v583 = vsel %vm577, %v580, %v582
        %v584 = vsel %vm576, %v563, %v566
        %v585 = vsel %vm579, %v572, 920167782
        %v586 = vsel %vm578, %v569, %v585
        %v587 = vsel %vm577, %v584, %v586
        %v588 = vsel %vm576, %v566, %v569
        %v589 = vsel %vm579, %v575, 1326507024
        %v590 = vsel %vm578, %v572, %v589
        %v591 = vsel %vm577, %v588, %v590
        %v592 = vshll.u32 %v552, 8
        %v593 = vmul.u32.u64.compose %v592, %v591
        %v594 = vextract.low.u32 %v593
        %v595 = vextract.high.u32 %v593
        %v596 = vmul.u32.u64.compose %v592, %v587
        %v597 = vextract.low.u32 %v596
        %v598 = vextract.high.u32 %v596
        %v599 = vmul.u32 %v592, %v583
        %v600 = vadd.s32 %v595, %v597
        %vm601 = vc.u32 %v595, %v597
        %v602 = vadd.s32 %v598, 1
        %v603 = vsel %vm601, %v602, %v598
        %v604 = vadd.s32 %v599, %v603
        %v605 = vadd.s32 %v604, 536870912
        %v606 = vshrl.u32 %v605, 30
        %v607 = vshll.u32 %v606, 30
        %v608 = vsub.s32 %v604, %v607
        %vm609 = vcmp.lt.s32.totalorder %v608, 0
        %v610 = vsub.s32 0, %v608
        %v611 = vsel %vm609, %v610, %v608
        %v612 = vclz %v611
        %v613 = vsub.s32 %v612, 2
        %vm614 = vcmp.gt.s32.totalorder 0, %v613
        %v615 = vsel %vm614, 0, %v613
        %v616 = vsub.s32 32, %v615
        %v617 = vshll.u32 %v608, %v615
        %v618 = vshrl.u32 %v600, %v616
        %v619 = vor.u32 %v617, %v618
        %v620 = vsub.s32 4294967266, %v615
        %v621 = vadd.s32 %v620, 127
        %v622 = vshll.u32 %v621, 23
        %v623 = vor.u32 4788187, %v622
        %v624 = vand.u32 2147483647, %v623
        %v626 = vcvt.s32.f32 %v619
        %v627 = vmul.f32 %v626, %v624
        %v628 = vxor.u32 %v627, 2147483648
        %v629 = vsel %vm546, %v628, %v627
        %v630 = vsub.s32 4, %v606
        %v631 = vsel %vm546, %v630, %v606
        %v632 = vsel %vm545, %v330, %v629
        %v633 = vsel %vm545, 0, %v631
        %v634 = vcosq.f32.pop %v632
        %v635 = vsinq.f32.pop %v632
        %vm636 = vweird.f32 %v330
        %v637 = vadd.s32 %v633, 3
        %v638 = vand.u32 %v637, 3
        %vm639 = vcmp.lt.s32.totalorder %v638, 2
        %vm640 = vcmp.eq.s32.totalorder %v638, 0
        %v641 = vxor.u32 %v635, 2147483648
        %v642 = vsel %vm640, %v634, %v641
        %vm643 = vcmp.eq.s32.totalorder %v638, 2
        %v644 = vxor.u32 %v634, 2147483648
        %v645 = vsel %vm643, %v644, %v635
        %v646 = vsel %vm639, %v642, %v645
        %v647 = vsel %vm636, nan, %v646
        %v648 = vand.u32 2147483647, %v331
        %vm649 = vcmp.le.f32.partialorder %v648, 0.7853982
        %vm650 = vcmp.lt.s32.totalorder %v331, 0
        %v651 = vand.u32 %v331, 2139095040
        %v652 = vshrl.u32 %v651, 23
        %v653 = vsub.s32 %v652, 127
        %v654 = vand.u32 2147483647, %v331
        %v655 = vand.u32 %v654, 8388607
        %v656 = vor.u32 %v655, 8388608
        %v657 = vsub.s32 0, %v656
        %v658 = vadd.s32 %v653, 1
        %vm659 = vcmp.gt.s32.totalorder %v658, 0
        %v660 = vsel %vm659, %v658, 0
        %v661 = vshrl.u32 %v660, 5
        %v662 = vand.u32 %v660, 31
        %v663 = vsub.s32 32, %v662
        %v664 = vshrl.u32 683565275, %v663
        %v665 = vshll.u32 683565275, %v662
        %v666 = vshrl.u32 2475754826, %v663
        %v667 = vor.u32 %v665, %v666
        %v668 = vshll.u32 2475754826, %v662
        %v669 = vshrl.u32 2131351028, %v663
        %v670 = vor.u32 %v668, %v669
        %v671 = vshll.u32 2131351028, %v662
        %v672 = vshrl.u32 2102212464, %v663
        %v673 = vor.u32 %v671, %v672
        %v674 = vshll.u32 2102212464, %v662
        %v675 = vshrl.u32 920167782, %v663
        %v676 = vor.u32 %v674, %v675
        %v677 = vshll.u32 920167782, %v662
        %v678 = vshrl.u32 1326507024, %v663
        %v679 = vor.u32 %v677, %v678
        %vm680 = vcmp.lt.s32.totalorder %v661, 1
        %vm681 = vcmp.lt.s32.totalorder %v661, 2
        %vm682 = vcmp.lt.s32.totalorder %v661, 3
        %vm683 = vcmp.lt.s32.totalorder %v661, 4
        %v684 = vsel %vm680, %v664, %v667
        %v685 = vsel %vm683, %v673, 2102212464
        %v686 = vsel %vm682, %v670, %v685
        %v687 = vsel %vm681, %v684, %v686
        %v688 = vsel %vm680, %v667, %v670
        %v689 = vsel %vm683, %v676, 920167782
        %v690 = vsel %vm682, %v673, %v689
        %v691 = vsel %vm681, %v688, %v690
        %v692 = vsel %vm680, %v670, %v673
        %v693 = vsel %vm683, %v679, 1326507024
        %v694 = vsel %vm682, %v676, %v693
        %v695 = vsel %vm681, %v692, %v694
        %v696 = vshll.u32 %v656, 8
        %v697 = vmul.u32.u64.compose %v696, %v695
        %v698 = vextract.low.u32 %v697
        %v699 = vextract.high.u32 %v697
        %v700 = vmul.u32.u64.compose %v696, %v691
        %v701 = vextract.low.u32 %v700
        %v702 = vextract.high.u32 %v700
        %v703 = vmul.u32 %v696, %v687
        %v704 = vadd.s32 %v699, %v701
        %vm705 = vc.u32 %v699, %v701
        %v706 = vadd.s32 %v702, 1
        %v707 = vsel %vm705, %v706, %v702
        %v708 = vadd.s32 %v703, %v707
        %v709 = vadd.s32 %v708, 536870912
        %v710 = vshrl.u32 %v709, 30
        %v711 = vshll.u32 %v710, 30
        %v712 = vsub.s32 %v708, %v711
        %vm713 = vcmp.lt.s32.totalorder %v712, 0
        %v714 = vsub.s32 0, %v712
        %v715 = vsel %vm713, %v714, %v712
        %v716 = vclz %v715
        %v717 = vsub.s32 %v716, 2
        %vm718 = vcmp.gt.s32.totalorder 0, %v717
        %v719 = vsel %vm718, 0, %v717
        %v720 = vsub.s32 32, %v719
        %v721 = vshll.u32 %v712, %v719
        %v722 = vshrl.u32 %v704, %v720
        %v723 = vor.u32 %v721, %v722
        %v724 = vsub.s32 4294967266, %v719
        %v725 = vadd.s32 %v724, 127
        %v726 = vshll.u32 %v725, 23
        %v727 = vor.u32 4788187, %v726
        %v728 = vand.u32 2147483647, %v727
        %v730 = vcvt.s32.f32 %v723
        %v731 = vmul.f32 %v730, %v728
        %v732 = vxor.u32 %v731, 2147483648
        %v733 = vsel %vm650, %v732, %v731
        %v734 = vsub.s32 4, %v710
        %v735 = vsel %vm650, %v734, %v710
        %v736 = vsel %vm649, %v331, %v733
        %v737 = vsel %vm649, 0, %v735
        %v738 = vcosq.f32.pop %v736
        %v739 = vsinq.f32.pop %v736
        %vm740 = vweird.f32 %v331
        %v741 = vadd.s32 %v737, 3
        %v742 = vand.u32 %v741, 3
        %vm743 = vcmp.lt.s32.totalorder %v742, 2
        %vm744 = vcmp.eq.s32.totalorder %v742, 0
        %v745 = vxor.u32 %v739, 2147483648
        %v746 = vsel %vm744, %v738, %v745
        %vm747 = vcmp.eq.s32.totalorder %v742, 2
        %v748 = vxor.u32 %v738, 2147483648
        %v749 = vsel %vm747, %v748, %v739
        %v750 = vsel %vm743, %v746, %v749
        %v751 = vsel %vm740, nan, %v750
        %v752 = vand.u32 2147483647, %v332
        %vm753 = vcmp.le.f32.partialorder %v752, 0.7853982
        %vm754 = vcmp.lt.s32.totalorder %v332, 0
        %v755 = vand.u32 %v332, 2139095040
        %v756 = vshrl.u32 %v755, 23
        %v757 = vsub.s32 %v756, 127
        %v758 = vand.u32 2147483647, %v332
        %v759 = vand.u32 %v758, 8388607
        %v760 = vor.u32 %v759, 8388608
        %v761 = vsub.s32 0, %v760
        %v762 = vadd.s32 %v757, 1
        %vm763 = vcmp.gt.s32.totalorder %v762, 0
        %v764 = vsel %vm763, %v762, 0
        %v765 = vshrl.u32 %v764, 5
        %v766 = vand.u32 %v764, 31
        %v767 = vsub.s32 32, %v766
        %v768 = vshrl.u32 683565275, %v767
        %v769 = vshll.u32 683565275, %v766
        %v770 = vshrl.u32 2475754826, %v767
        %v771 = vor.u32 %v769, %v770
        %v772 = vshll.u32 2475754826, %v766
        %v773 = vshrl.u32 2131351028, %v767
        %v774 = vor.u32 %v772, %v773
        %v775 = vshll.u32 2131351028, %v766
        %v776 = vshrl.u32 2102212464, %v767
        %v777 = vor.u32 %v775, %v776
        %v778 = vshll.u32 2102212464, %v766
        %v779 = vshrl.u32 920167782, %v767
        %v780 = vor.u32 %v778, %v779
        %v781 = vshll.u32 920167782, %v766
        %v782 = vshrl.u32 1326507024, %v767
        %v783 = vor.u32 %v781, %v782
        %vm784 = vcmp.lt.s32.totalorder %v765, 1
        %vm785 = vcmp.lt.s32.totalorder %v765, 2
        %vm786 = vcmp.lt.s32.totalorder %v765, 3
        %vm787 = vcmp.lt.s32.totalorder %v765, 4
        %v788 = vsel %vm784, %v768, %v771
        %v789 = vsel %vm787, %v777, 2102212464
        %v790 = vsel %vm786, %v774, %v789
        %v791 = vsel %vm785, %v788, %v790
        %v792 = vsel %vm784, %v771, %v774
        %v793 = vsel %vm787, %v780, 920167782
        %v794 = vsel %vm786, %v777, %v793
        %v795 = vsel %vm785, %v792, %v794
        %v796 = vsel %vm784, %v774, %v777
        %v797 = vsel %vm787, %v783, 1326507024
        %v798 = vsel %vm786, %v780, %v797
        %v799 = vsel %vm785, %v796, %v798
        %v800 = vshll.u32 %v760, 8
        %v801 = vmul.u32.u64.compose %v800, %v799
        %v802 = vextract.low.u32 %v801
        %v803 = vextract.high.u32 %v801
        %v804 = vmul.u32.u64.compose %v800, %v795
        %v805 = vextract.low.u32 %v804
        %v806 = vextract.high.u32 %v804
        %v807 = vmul.u32 %v800, %v791
        %v808 = vadd.s32 %v803, %v805
        %vm809 = vc.u32 %v803, %v805
        %v810 = vadd.s32 %v806, 1
        %v811 = vsel %vm809, %v810, %v806
        %v812 = vadd.s32 %v807, %v811
        %v813 = vadd.s32 %v812, 536870912
        %v814 = vshrl.u32 %v813, 30
        %v815 = vshll.u32 %v814, 30
        %v816 = vsub.s32 %v812, %v815
        %vm817 = vcmp.lt.s32.totalorder %v816, 0
        %v818 = vsub.s32 0, %v816
        %v819 = vsel %vm817, %v818, %v816
        %v820 = vclz %v819
        %v821 = vsub.s32 %v820, 2
        %vm822 = vcmp.gt.s32.totalorder 0, %v821
        %v823 = vsel %vm822, 0, %v821
        %v824 = vsub.s32 32, %v823
        %v825 = vshll.u32 %v816, %v823
        %v826 = vshrl.u32 %v808, %v824
        %v827 = vor.u32 %v825, %v826
        %v828 = vsub.s32 4294967266, %v823
        %v829 = vadd.s32 %v828, 127
        %v830 = vshll.u32 %v829, 23
        %v831 = vor.u32 4788187, %v830
        %v832 = vand.u32 2147483647, %v831
        %v834 = vcvt.s32.f32 %v827
        %v835 = vmul.f32 %v834, %v832
        %v836 = vxor.u32 %v835, 2147483648
        %v837 = vsel %vm754, %v836, %v835
        %v838 = vsub.s32 4, %v814
        %v839 = vsel %vm754, %v838, %v814
        %v840 = vsel %vm753, %v332, %v837
        %v841 = vsel %vm753, 0, %v839
        %v842 = vcosq.f32.pop %v840
        %v843 = vsinq.f32.pop %v840
        %vm844 = vweird.f32 %v332
        %v845 = vadd.s32 %v841, 3
        %v846 = vand.u32 %v845, 3
        %vm847 = vcmp.lt.s32.totalorder %v846, 2
        %vm848 = vcmp.eq.s32.totalorder %v846, 0
        %v849 = vxor.u32 %v843, 2147483648
        %v850 = vsel %vm848, %v842, %v849
        %vm851 = vcmp.eq.s32.totalorder %v846, 2
        %v852 = vxor.u32 %v842, 2147483648
        %v853 = vsel %vm851, %v852, %v843
        %v854 = vsel %vm847, %v850, %v853
        %v855 = vsel %vm844, nan, %v854
        %v856 = vand.u32 2147483647, %v333
        %vm857 = vcmp.le.f32.partialorder %v856, 0.7853982
        %vm858 = vcmp.lt.s32.totalorder %v333, 0
        %v859 = vand.u32 %v333, 2139095040
        %v860 = vshrl.u32 %v859, 23
        %v861 = vsub.s32 %v860, 127
        %v862 = vand.u32 2147483647, %v333
        %v863 = vand.u32 %v862, 8388607
        %v864 = vor.u32 %v863, 8388608
        %v865 = vsub.s32 0, %v864
        %v866 = vadd.s32 %v861, 1
        %vm867 = vcmp.gt.s32.totalorder %v866, 0
        %v868 = vsel %vm867, %v866, 0
        %v869 = vshrl.u32 %v868, 5
        %v870 = vand.u32 %v868, 31
        %v871 = vsub.s32 32, %v870
        %v872 = vshrl.u32 683565275, %v871
        %v873 = vshll.u32 683565275, %v870
        %v874 = vshrl.u32 2475754826, %v871
        %v875 = vor.u32 %v873, %v874
        %v876 = vshll.u32 2475754826, %v870
        %v877 = vshrl.u32 2131351028, %v871
        %v878 = vor.u32 %v876, %v877
        %v879 = vshll.u32 2131351028, %v870
        %v880 = vshrl.u32 2102212464, %v871
        %v881 = vor.u32 %v879, %v880
        %v882 = vshll.u32 2102212464, %v870
        %v883 = vshrl.u32 920167782, %v871
        %v884 = vor.u32 %v882, %v883
        %v885 = vshll.u32 920167782, %v870
        %v886 = vshrl.u32 1326507024, %v871
        %v887 = vor.u32 %v885, %v886
        %vm888 = vcmp.lt.s32.totalorder %v869, 1
        %vm889 = vcmp.lt.s32.totalorder %v869, 2
        %vm890 = vcmp.lt.s32.totalorder %v869, 3
        %vm891 = vcmp.lt.s32.totalorder %v869, 4
        %v892 = vsel %vm888, %v872, %v875
        %v893 = vsel %vm891, %v881, 2102212464
        %v894 = vsel %vm890, %v878, %v893
        %v895 = vsel %vm889, %v892, %v894
        %v896 = vsel %vm888, %v875, %v878
        %v897 = vsel %vm891, %v884, 920167782
        %v898 = vsel %vm890, %v881, %v897
        %v899 = vsel %vm889, %v896, %v898
        %v900 = vsel %vm888, %v878, %v881
        %v901 = vsel %vm891, %v887, 1326507024
        %v902 = vsel %vm890, %v884, %v901
        %v903 = vsel %vm889, %v900, %v902
        %v904 = vshll.u32 %v864, 8
        %v905 = vmul.u32.u64.compose %v904, %v903
        %v906 = vextract.low.u32 %v905
        %v907 = vextract.high.u32 %v905
        %v908 = vmul.u32.u64.compose %v904, %v899
        %v909 = vextract.low.u32 %v908
        %v910 = vextract.high.u32 %v908
        %v911 = vmul.u32 %v904, %v895
        %v912 = vadd.s32 %v907, %v909
        %vm913 = vc.u32 %v907, %v909
        %v914 = vadd.s32 %v910, 1
        %v915 = vsel %vm913, %v914, %v910
        %v916 = vadd.s32 %v911, %v915
        %v917 = vadd.s32 %v916, 536870912
        %v918 = vshrl.u32 %v917, 30
        %v919 = vshll.u32 %v918, 30
        %v920 = vsub.s32 %v916, %v919
        %vm921 = vcmp.lt.s32.totalorder %v920, 0
        %v922 = vsub.s32 0, %v920
        %v923 = vsel %vm921, %v922, %v920
        %v924 = vclz %v923
        %v925 = vsub.s32 %v924, 2
        %vm926 = vcmp.gt.s32.totalorder 0, %v925
        %v927 = vsel %vm926, 0, %v925
        %v928 = vsub.s32 32, %v927
        %v929 = vshll.u32 %v920, %v927
        %v930 = vshrl.u32 %v912, %v928
        %v931 = vor.u32 %v929, %v930
        %v932 = vsub.s32 4294967266, %v927
        %v933 = vadd.s32 %v932, 127
        %v934 = vshll.u32 %v933, 23
        %v935 = vor.u32 4788187, %v934
        %v936 = vand.u32 2147483647, %v935
        %v938 = vcvt.s32.f32 %v931
        %v939 = vmul.f32 %v938, %v936
        %v940 = vxor.u32 %v939, 2147483648
        %v941 = vsel %vm858, %v940, %v939
        %v942 = vsub.s32 4, %v918
        %v943 = vsel %vm858, %v942, %v918
        %v944 = vsel %vm857, %v333, %v941
        %v945 = vsel %vm857, 0, %v943
        %v946 = vcosq.f32.pop %v944
        %v947 = vsinq.f32.pop %v944
        %vm948 = vweird.f32 %v333
        %v949 = vadd.s32 %v945, 3
        %v950 = vand.u32 %v949, 3
        %vm951 = vcmp.lt.s32.totalorder %v950, 2
        %vm952 = vcmp.eq.s32.totalorder %v950, 0
        %v953 = vxor.u32 %v947, 2147483648
        %v954 = vsel %vm952, %v946, %v953
        %vm955 = vcmp.eq.s32.totalorder %v950, 2
        %v956 = vxor.u32 %v946, 2147483648
        %v957 = vsel %vm955, %v956, %v947
        %v958 = vsel %vm951, %v954, %v957
        %v959 = vsel %vm948, nan, %v958
        %v960 = vand.u32 2147483647, %v334
        %vm961 = vcmp.le.f32.partialorder %v960, 0.7853982
        %vm962 = vcmp.lt.s32.totalorder %v334, 0
        %v963 = vand.u32 %v334, 2139095040
        %v964 = vshrl.u32 %v963, 23
        %v965 = vsub.s32 %v964, 127
        %v966 = vand.u32 2147483647, %v334
        %v967 = vand.u32 %v966, 8388607
        %v968 = vor.u32 %v967, 8388608
        %v969 = vsub.s32 0, %v968
        %v970 = vadd.s32 %v965, 1
        %vm971 = vcmp.gt.s32.totalorder %v970, 0
        %v972 = vsel %vm971, %v970, 0
        %v973 = vshrl.u32 %v972, 5
        %v974 = vand.u32 %v972, 31
        %v975 = vsub.s32 32, %v974
        %v976 = vshrl.u32 683565275, %v975
        %v977 = vshll.u32 683565275, %v974
        %v978 = vshrl.u32 2475754826, %v975
        %v979 = vor.u32 %v977, %v978
        %v980 = vshll.u32 2475754826, %v974
        %v981 = vshrl.u32 2131351028, %v975
        %v982 = vor.u32 %v980, %v981
        %v983 = vshll.u32 2131351028, %v974
        %v984 = vshrl.u32 2102212464, %v975
        %v985 = vor.u32 %v983, %v984
        %v986 = vshll.u32 2102212464, %v974
        %v987 = vshrl.u32 920167782, %v975
        %v988 = vor.u32 %v986, %v987
        %v989 = vshll.u32 920167782, %v974
        %v990 = vshrl.u32 1326507024, %v975
        %v991 = vor.u32 %v989, %v990
        %vm992 = vcmp.lt.s32.totalorder %v973, 1
        %vm993 = vcmp.lt.s32.totalorder %v973, 2
        %vm994 = vcmp.lt.s32.totalorder %v973, 3
        %vm995 = vcmp.lt.s32.totalorder %v973, 4
        %v996 = vsel %vm992, %v976, %v979
        %v997 = vsel %vm995, %v985, 2102212464
        %v998 = vsel %vm994, %v982, %v997
        %v999 = vsel %vm993, %v996, %v998
        %v1000 = vsel %vm992, %v979, %v982
        %v1001 = vsel %vm995, %v988, 920167782
        %v1002 = vsel %vm994, %v985, %v1001
        %v1003 = vsel %vm993, %v1000, %v1002
        %v1004 = vsel %vm992, %v982, %v985
        %v1005 = vsel %vm995, %v991, 1326507024
        %v1006 = vsel %vm994, %v988, %v1005
        %v1007 = vsel %vm993, %v1004, %v1006
        %v1008 = vshll.u32 %v968, 8
        %v1009 = vmul.u32.u64.compose %v1008, %v1007
        %v1010 = vextract.low.u32 %v1009
        %v1011 = vextract.high.u32 %v1009
        %v1012 = vmul.u32.u64.compose %v1008, %v1003
        %v1013 = vextract.low.u32 %v1012
        %v1014 = vextract.high.u32 %v1012
        %v1015 = vmul.u32 %v1008, %v999
        %v1016 = vadd.s32 %v1011, %v1013
        %vm1017 = vc.u32 %v1011, %v1013
        %v1018 = vadd.s32 %v1014, 1
        %v1019 = vsel %vm1017, %v1018, %v1014
        %v1020 = vadd.s32 %v1015, %v1019
        %v1021 = vadd.s32 %v1020, 536870912
        %v1022 = vshrl.u32 %v1021, 30
        %v1023 = vshll.u32 %v1022, 30
        %v1024 = vsub.s32 %v1020, %v1023
        %vm1025 = vcmp.lt.s32.totalorder %v1024, 0
        %v1026 = vsub.s32 0, %v1024
        %v1027 = vsel %vm1025, %v1026, %v1024
        %v1028 = vclz %v1027
        %v1029 = vsub.s32 %v1028, 2
        %vm1030 = vcmp.gt.s32.totalorder 0, %v1029
        %v1031 = vsel %vm1030, 0, %v1029
        %v1032 = vsub.s32 32, %v1031
        %v1033 = vshll.u32 %v1024, %v1031
        %v1034 = vshrl.u32 %v1016, %v1032
        %v1035 = vor.u32 %v1033, %v1034
        %v1036 = vsub.s32 4294967266, %v1031
        %v1037 = vadd.s32 %v1036, 127
        %v1038 = vshll.u32 %v1037, 23
        %v1039 = vor.u32 4788187, %v1038
        %v1040 = vand.u32 2147483647, %v1039
        %v1042 = vcvt.s32.f32 %v1035
        %v1043 = vmul.f32 %v1042, %v1040
        %v1044 = vxor.u32 %v1043, 2147483648
        %v1045 = vsel %vm962, %v1044, %v1043
        %v1046 = vsub.s32 4, %v1022
        %v1047 = vsel %vm962, %v1046, %v1022
        %v1048 = vsel %vm961, %v334, %v1045
        %v1049 = vsel %vm961, 0, %v1047
        %v1050 = vcosq.f32.pop %v1048
        %v1051 = vsinq.f32.pop %v1048
        %vm1052 = vweird.f32 %v334
        %v1053 = vadd.s32 %v1049, 3
        %v1054 = vand.u32 %v1053, 3
        %vm1055 = vcmp.lt.s32.totalorder %v1054, 2
        %vm1056 = vcmp.eq.s32.totalorder %v1054, 0
        %v1057 = vxor.u32 %v1051, 2147483648
        %v1058 = vsel %vm1056, %v1050, %v1057
        %vm1059 = vcmp.eq.s32.totalorder %v1054, 2
        %v1060 = vxor.u32 %v1050, 2147483648
        %v1061 = vsel %vm1059, %v1060, %v1051
        %v1062 = vsel %vm1055, %v1058, %v1061
        %v1063 = vsel %vm1052, nan, %v1062
        %v1064 = vand.u32 2147483647, %v335
        %vm1065 = vcmp.le.f32.partialorder %v1064, 0.7853982
        %vm1066 = vcmp.lt.s32.totalorder %v335, 0
        %v1067 = vand.u32 %v335, 2139095040
        %v1068 = vshrl.u32 %v1067, 23
        %v1069 = vsub.s32 %v1068, 127
        %v1070 = vand.u32 2147483647, %v335
        %v1071 = vand.u32 %v1070, 8388607
        %v1072 = vor.u32 %v1071, 8388608
        %v1073 = vsub.s32 0, %v1072
        %v1074 = vadd.s32 %v1069, 1
        %vm1075 = vcmp.gt.s32.totalorder %v1074, 0
        %v1076 = vsel %vm1075, %v1074, 0
        %v1077 = vshrl.u32 %v1076, 5
        %v1078 = vand.u32 %v1076, 31
        %v1079 = vsub.s32 32, %v1078
        %v1080 = vshrl.u32 683565275, %v1079
        %v1081 = vshll.u32 683565275, %v1078
        %v1082 = vshrl.u32 2475754826, %v1079
        %v1083 = vor.u32 %v1081, %v1082
        %v1084 = vshll.u32 2475754826, %v1078
        %v1085 = vshrl.u32 2131351028, %v1079
        %v1086 = vor.u32 %v1084, %v1085
        %v1087 = vshll.u32 2131351028, %v1078
        %v1088 = vshrl.u32 2102212464, %v1079
        %v1089 = vor.u32 %v1087, %v1088
        %v1090 = vshll.u32 2102212464, %v1078
        %v1091 = vshrl.u32 920167782, %v1079
        %v1092 = vor.u32 %v1090, %v1091
        %v1093 = vshll.u32 920167782, %v1078
        %v1094 = vshrl.u32 1326507024, %v1079
        %v1095 = vor.u32 %v1093, %v1094
        %vm1096 = vcmp.lt.s32.totalorder %v1077, 1
        %vm1097 = vcmp.lt.s32.totalorder %v1077, 2
        %vm1098 = vcmp.lt.s32.totalorder %v1077, 3
        %vm1099 = vcmp.lt.s32.totalorder %v1077, 4
        %v1100 = vsel %vm1096, %v1080, %v1083
        %v1101 = vsel %vm1099, %v1089, 2102212464
        %v1102 = vsel %vm1098, %v1086, %v1101
        %v1103 = vsel %vm1097, %v1100, %v1102
        %v1104 = vsel %vm1096, %v1083, %v1086
        %v1105 = vsel %vm1099, %v1092, 920167782
        %v1106 = vsel %vm1098, %v1089, %v1105
        %v1107 = vsel %vm1097, %v1104, %v1106
        %v1108 = vsel %vm1096, %v1086, %v1089
        %v1109 = vsel %vm1099, %v1095, 1326507024
        %v1110 = vsel %vm1098, %v1092, %v1109
        %v1111 = vsel %vm1097, %v1108, %v1110
        %v1112 = vshll.u32 %v1072, 8
        %v1113 = vmul.u32.u64.compose %v1112, %v1111
        %v1114 = vextract.low.u32 %v1113
        %v1115 = vextract.high.u32 %v1113
        %v1116 = vmul.u32.u64.compose %v1112, %v1107
        %v1117 = vextract.low.u32 %v1116
        %v1118 = vextract.high.u32 %v1116
        %v1119 = vmul.u32 %v1112, %v1103
        %v1120 = vadd.s32 %v1115, %v1117
        %vm1121 = vc.u32 %v1115, %v1117
        %v1122 = vadd.s32 %v1118, 1
        %v1123 = vsel %vm1121, %v1122, %v1118
        %v1124 = vadd.s32 %v1119, %v1123
        %v1125 = vadd.s32 %v1124, 536870912
        %v1126 = vshrl.u32 %v1125, 30
        %v1127 = vshll.u32 %v1126, 30
        %v1128 = vsub.s32 %v1124, %v1127
        %vm1129 = vcmp.lt.s32.totalorder %v1128, 0
        %v1130 = vsub.s32 0, %v1128
        %v1131 = vsel %vm1129, %v1130, %v1128
        %v1132 = vclz %v1131
        %v1133 = vsub.s32 %v1132, 2
        %vm1134 = vcmp.gt.s32.totalorder 0, %v1133
        %v1135 = vsel %vm1134, 0, %v1133
        %v1136 = vsub.s32 32, %v1135
        %v1137 = vshll.u32 %v1128, %v1135
        %v1138 = vshrl.u32 %v1120, %v1136
        %v1139 = vor.u32 %v1137, %v1138
        %v1140 = vsub.s32 4294967266, %v1135
        %v1141 = vadd.s32 %v1140, 127
        %v1142 = vshll.u32 %v1141, 23
        %v1143 = vor.u32 4788187, %v1142
        %v1144 = vand.u32 2147483647, %v1143
        %v1146 = vcvt.s32.f32 %v1139
        %v1147 = vmul.f32 %v1146, %v1144
        %v1148 = vxor.u32 %v1147, 2147483648
        %v1149 = vsel %vm1066, %v1148, %v1147
        %v1150 = vsub.s32 4, %v1126
        %v1151 = vsel %vm1066, %v1150, %v1126
        %v1152 = vsel %vm1065, %v335, %v1149
        %v1153 = vsel %vm1065, 0, %v1151
        %v1154 = vcosq.f32.pop %v1152
        %v1155 = vsinq.f32.pop %v1152
        %vm1156 = vweird.f32 %v335
        %v1157 = vadd.s32 %v1153, 3
        %v1158 = vand.u32 %v1157, 3
        %vm1159 = vcmp.lt.s32.totalorder %v1158, 2
        %vm1160 = vcmp.eq.s32.totalorder %v1158, 0
        %v1161 = vxor.u32 %v1155, 2147483648
        %v1162 = vsel %vm1160, %v1154, %v1161
        %vm1163 = vcmp.eq.s32.totalorder %v1158, 2
        %v1164 = vxor.u32 %v1154, 2147483648
        %v1165 = vsel %vm1163, %v1164, %v1155
        %v1166 = vsel %vm1159, %v1162, %v1165
        %v1167 = vsel %vm1156, nan, %v1166
        %v1168 = vld [vmem:[%s3] sm:$0xff]
        %v1169 = vld [vmem:[%s3 + $0x8] sm:$0xff]
        %v1170 = vld [vmem:[%s3 + $0x10] sm:$0xff]
        %v1171 = vld [vmem:[%s3 + $0x18] sm:$0xff]
        %v1172 = vld [vmem:[%s3 + $0x20] sm:$0xff]
        %v1173 = vld [vmem:[%s3 + $0x28] sm:$0xff]
        %v1174 = vld [vmem:[%s3 + $0x30] sm:$0xff]
        %v1175 = vld [vmem:[%s3 + $0x38] sm:$0xff]
        %1177 = vset.pattern.permute.xlu0 0
        %1178 = vperm.xlu0 %1177, %v1168
        %v1179 = vpop.permute.xlu0 %1178
        %1182 = vset.pattern.permute.xlu0 0
        %1183 = vperm.xlu0 %1182, %v1169
        %v1184 = vpop.permute.xlu0 %1183
        %1187 = vset.pattern.permute.xlu0 0
        %1188 = vperm.xlu0 %1187, %v1170
        %v1189 = vpop.permute.xlu0 %1188
        %1192 = vset.pattern.permute.xlu0 0
        %1193 = vperm.xlu0 %1192, %v1171
        %v1194 = vpop.permute.xlu0 %1193
        %1197 = vset.pattern.permute.xlu0 0
        %1198 = vperm.xlu0 %1197, %v1172
        %v1199 = vpop.permute.xlu0 %1198
        %1202 = vset.pattern.permute.xlu0 0
        %1203 = vperm.xlu0 %1202, %v1173
        %v1204 = vpop.permute.xlu0 %1203
        %1207 = vset.pattern.permute.xlu0 0
        %1208 = vperm.xlu0 %1207, %v1174
        %v1209 = vpop.permute.xlu0 %1208
        %1212 = vset.pattern.permute.xlu0 0
        %1213 = vperm.xlu0 %1212, %v1175
        %v1214 = vpop.permute.xlu0 %1213
        %v1216 = vmul.f32 %v1179, %v439
        %v1217 = vmul.f32 %v1184, %v543
        %v1218 = vmul.f32 %v1189, %v647
        %v1219 = vmul.f32 %v1194, %v751
        %v1220 = vmul.f32 %v1199, %v855
        %v1221 = vmul.f32 %v1204, %v959
        %v1222 = vmul.f32 %v1209, %v1063
        %v1223 = vmul.f32 %v1214, %v1167
        %v1224 = vadd.f32 %v1216, %v1217
        %v1225 = vadd.f32 %v1224, %v1218
        %v1226 = vadd.f32 %v1225, %v1219
        %v1227 = vadd.f32 %v1226, %v1220
        %v1228 = vadd.f32 %v1227, %v1221
        %v1229 = vadd.f32 %v1228, %v1222
        %v1230 = vadd.f32 %v1229, %v1223
        %v1231 = vrot.slane %v1230, 4
        %v1232 = vadd.f32 %v1230, %v1231
        %v1233 = vrot.slane %v1232, 2
        %v1234 = vadd.f32 %v1232, %v1233
        %v1235 = vrot.slane %v1234, 1
        %v1236 = vadd.f32 %v1234, %v1235
        %s1237 = sld [smem:[#allocation2]]
        %v1238 = vstv %s1237
        %v1239 = vadd.f32 %v1236, %v1238
        %1240 = vst [vmem:[%s213] sm:$0x1] %v1239
        %s1241 = sand.u32 %s138, 1
        %s1242 = scalar_lea.sflag [#allocation4], %s1241
        %s1243 = sand.u32 %s138, 1
        %s1244 = scalar_lea.vmem [#allocation3], %s1243
        // Predicated region
        $region41: #{tpu_custom_call.1} parent=39 // pred_check
          %p1245 = pneg %p148
        $region42: #{tpu_custom_call.1} parent=39 // pred_check_branch
          %1247 = sbr.rel (%p1245) target = $region44
        $region43: #{tpu_custom_call.1} parent=39 // pred_region
          %s1249 = ssub.s32 16, 16
          %1250 = vsyncadd %s1242, %s1249
          %s1251 = smul.addr %s20, 16
          %s1252 = scalar_lea.hbm %s5, %s1251
          %s1254 = sshll.u32 %s1244, 4
          %s1255 = int_to_ptr.vmem [resolvable:$true] %s1254
          %1257 = dma.vmem_to_hbm [thread:$0]  %s1255, 16, %s1252, %s1242
        $region44: #{tpu_custom_call.1} parent=39 // pred_fallthru
          _
      $region40: #{tpu_custom_call.1} parent=5 // pred_fallthru
        _
      %p1258 = scmp.le.s32.totalorder 2, %s15
      // Predicated region
      $region45: #{tpu_custom_call.1} parent=5 // pred_check
        %p1259 = pneg %p1258
      $region46: #{tpu_custom_call.1} parent=5 // pred_check_branch
        %1261 = sbr.rel (%p1259) target = $region48
      $region47: #{tpu_custom_call.1} parent=5 // pred_region
        %s1262 = ssub.s32 %s15, 2
        // Predicated region
        $region49: #{tpu_custom_call.1} parent=47 // pred_check
          %p1263 = pneg %p154
        $region50: #{tpu_custom_call.1} parent=47 // pred_check_branch
          %1265 = sbr.rel (%p1263) target = $region52
        $region51: #{tpu_custom_call.1} parent=47 // pred_region
          %s1266 = sand.u32 %s139, 1
          %s1267 = scalar_lea.sflag [#allocation4], %s1266
          %s1268 = sand.u32 %s139, 1
          %s1269 = scalar_lea.vmem [#allocation3], %s1268
          %1270 = dma.done %s1267, 16
        $region52: #{tpu_custom_call.1} parent=47 // pred_fallthru
          _
      $region48: #{tpu_custom_call.1} parent=5 // pred_fallthru
        _
    $region6: #{tpu_custom_call.1} parent=1 // loop_footer
      %s19 = sadd.s32 1, %s15
    $region7: #{tpu_custom_call.1} parent=1 // loop_footer_branch
      %14 = sbr.rel target = $region3
    $region8: #{tpu_custom_call.1} parent=1 // loop_exit
      _
    %1271 = vsyncpa [#allocation4], 1
    %s1272 = scalar_lea.sflag [#allocation4], 1
    %1273 = vsyncpa %s1272, 1

</llo_original>
